<compile_context>
chip_gen: v7x
topology: tpu7x:2x2x1
jax: 0.10.0
libtpu: 0.0.40
codegen_flags: <defaults>
</compile_context>

<pallas_src>
import functools

import numpy as np
import jax
import jax.numpy as jnp
from jax import lax
from jax.experimental import pallas as pl
from jax.experimental.pallas import tpu as pltpu

_PAD_BIAS = 1e30  # bias for padded vocab columns -> e = -1e30 -> exp() == 0


def _round_up(x, m):
    return (x + m - 1) // m * m


def _physical_vmem_bytes():
    """Per-core VMEM capacity; conservative fallback (v7x) if query fails."""
    try:
        info = pltpu.get_tpu_info()
        v = getattr(info, "vmem_capacity_bytes", None)
        if v:
            return int(v)
    except Exception:
        pass
    return 64 * 1024 * 1024


def _vmem_limit_bytes(need_bytes, phys):
    """Scoped-VMEM request: enough for our buffers + margin, below physical."""
    lo = 32 * 1024 * 1024
    hi = max(lo, phys - 16 * 1024 * 1024)
    want = int(need_bytes * 1.5) + (4 << 20)
    return int(max(lo, min(want, hi)))


# ---------------------------------------------------------------------------
# Decode pass 1: stream W4 over the vocab axis, emit per-tile negated logits
# and online-softmax stats (m, l).  Grid: (nv,) arbitrary; W4 fetched once.
# ---------------------------------------------------------------------------
def _decode_logits_kernel(h_ref, w4_ref, b4_ref, e_ref, m_out, l_out, m_sc, l_sc):
    v = pl.program_id(0)

    @pl.when(v == 0)
    def _():
        m_sc[...] = jnp.full_like(m_sc, -jnp.inf)
        l_sc[...] = jnp.zeros_like(l_sc)

    # logits_tile = h @ W4_tile^T  (contract h dim 1 with W4 dim 1; no transpose)
    logits = lax.dot_general(
        h_ref[...], w4_ref[...],
        dimension_numbers=(((1,), (1,)), ((), ())),
        preferred_element_type=jnp.float32)
    e = -(logits + b4_ref[...])            # (B, tv) f32
    e_ref[...] = e                         # streamed out, no resident (B, V) block

    # Online softmax statistics over the vocab axis.
    m_prev = m_sc[...]
    m_new = jnp.maximum(m_prev, jnp.max(e, axis=-1, keepdims=True))
    l_new = (l_sc[...] * jnp.exp(m_prev - m_new)
             + jnp.sum(jnp.exp(e - m_new), axis=-1, keepdims=True))
    m_sc[...] = m_new
    l_sc[...] = l_new
    m_out[...] = m_new                     # final grid step leaves the true max/sum
    l_out[...] = l_new


# ---------------------------------------------------------------------------
# Decode pass 2: trivially parallel streamed normalize  p = exp(e - m) / l.
# ---------------------------------------------------------------------------
def _softmax_norm_kernel(m_ref, l_ref, e_ref, p_ref, *, approx):
    inv_l = pl.reciprocal(l_ref[...], approx=approx)
    p_ref[...] = jnp.exp(e_ref[...] - m_ref[...]) * inv_l


def prepare_decode_weights(w4, b4, *, compute_dtype=jnp.bfloat16, max_batch=256):
    """Cast + pad fc4 weights once per weight set (hoist out of the token loop)."""
    V, H = w4.shape
    assert b4.shape == (V,)
    it = np.dtype(compute_dtype).itemsize
    phys = _physical_vmem_bytes()
    budget = phys // 2  # mirror the scoped-VMEM default, leave compiler headroom

    H_pad = _round_up(H, 128)
    cap = _round_up(V, 128)
    resident = max_batch * H_pad * it + (64 << 10)
    tv = min(128, cap)
    for cand in (2048, 1024, 512, 256, 128):
        t = min(cand, cap)
        need = 2 * t * H_pad * it + 2 * max_batch * t * 4 + 2 * t * 4 + resident
        if need <= budget:
            tv = t
            break
    V_pad = _round_up(V, tv)

    w4_p = w4
    if V_pad != V or H_pad != H:
        w4_p = jnp.pad(w4, ((0, V_pad - V), (0, H_pad - H)))
    w4_p = w4_p.astype(compute_dtype)
    b4_p = b4.astype(jnp.float32)
    if V_pad != V:
        b4_p = jnp.concatenate(
            [b4_p, jnp.full((V_pad - V,), _PAD_BIAS, jnp.float32)])
    b4_p = b4_p.reshape(1, V_pad)

    return dict(w4=w4_p, b4=b4_p, V=V, H=H, V_pad=V_pad, H_pad=H_pad,
                tv=tv, compute_dtype=compute_dtype, phys_vmem=phys)


def decode_step(h, prep):
    """Per-token hot path: p = softmax(-(h @ W4^T + b4), axis=1)."""
    B, H = h.shape
    assert H == prep["H"]
    cd = prep["compute_dtype"]
    H_pad, V, V_pad, tv = prep["H_pad"], prep["V"], prep["V_pad"], prep["tv"]
    it = np.dtype(cd).itemsize
    nv = V_pad // tv

    h_c = h.astype(cd)
    if H_pad != H:
        h_c = jnp.pad(h_c, ((0, 0), (0, H_pad - H)))

    # Pass 1: logits + online softmax stats.  W4 streamed (fetched once); h resident.
    need1 = (2 * tv * H_pad * it + 2 * B * tv * 4 + 2 * tv * 4
             + B * H_pad * it + 8 * B * 4 + (64 << 10))
    cost1 = pl.CostEstimate(
        flops=2 * B * H_pad * V_pad + 6 * B * V_pad,
        transcendentals=2 * B * V_pad,
        bytes_accessed=(B * H_pad * it + V_pad * H_pad * it + V_pad * 4
                        + B * V_pad * 4 + 2 * B * 4))
    e, m, l = pl.pallas_call(
        _decode_logits_kernel,
        out_shape=(jax.ShapeDtypeStruct((B, V_pad), jnp.float32),
                   jax.ShapeDtypeStruct((B, 1), jnp.float32),
                   jax.ShapeDtypeStruct((B, 1), jnp.float32)),
        grid_spec=pltpu.PrefetchScalarGridSpec(
            num_scalar_prefetch=0,
            grid=(nv,),
            in_specs=[
                pl.BlockSpec((B, H_pad), lambda v: (0, 0)),   # h: resident over V
                pl.BlockSpec((tv, H_pad), lambda v: (v, 0)),  # W4: streamed once
                pl.BlockSpec((1, tv), lambda v: (0, v)),      # b4 tile
            ],
            out_specs=[
                pl.BlockSpec((B, tv), lambda v: (0, v)),      # negated logits, streamed
                pl.BlockSpec((B, 1), lambda v: (0, 0)),       # running max
                pl.BlockSpec((B, 1), lambda v: (0, 0)),       # running sum
            ],
            scratch_shapes=[pltpu.VMEM((B, 1), jnp.float32),
                            pltpu.VMEM((B, 1), jnp.float32)]),
        compiler_params=pltpu.CompilerParams(
            dimension_semantics=("arbitrary",),
            vmem_limit_bytes=_vmem_limit_bytes(need1, prep["phys_vmem"])),
        cost_estimate=cost1,
    )(h_c, prep["w4"], prep["b4"])

    # Pass 2: normalize (elementwise, parallel).  Extra HBM ~2*B*V*4 B (<1% of
    # the W4 stream at decode batch sizes).
    approx = np.dtype(cd) != np.dtype(jnp.float32)
    need2 = 4 * B * tv * 4 + 8 * B * 4 + (64 << 10)
    cost2 = pl.CostEstimate(
        flops=2 * B * V_pad,
        transcendentals=B * V_pad + B,
        bytes_accessed=2 * B * V_pad * 4 + 2 * B * 4)
    p = pl.pallas_call(
        functools.partial(_softmax_norm_kernel, approx=approx),
        out_shape=jax.ShapeDtypeStruct((B, V_pad), jnp.float32),
        grid_spec=pltpu.PrefetchScalarGridSpec(
            num_scalar_prefetch=0,
            grid=(nv,),
            in_specs=[
                pl.BlockSpec((B, 1), lambda v: (0, 0)),
                pl.BlockSpec((B, 1), lambda v: (0, 0)),
                pl.BlockSpec((B, tv), lambda v: (0, v)),
            ],
            out_specs=pl.BlockSpec((B, tv), lambda v: (0, v))),
        compiler_params=pltpu.CompilerParams(
            dimension_semantics=("parallel",),
            vmem_limit_bytes=_vmem_limit_bytes(need2, prep["phys_vmem"])),
        cost_estimate=cost2,
    )(m, l, e)

    return p[:, :V] if V_pad != V else p


# ---------------------------------------------------------------------------
# Weight-only path (h-independent; hoist out of the decode loop):
#   st = relu(W4^T @ [W51; W52]^T + [b51; b52])  ->  (H, 2E), split outside.
# Grid: (nh parallel, nv arbitrary); f32 accumulation in the resident (th, 2E)
# output block, bias + ReLU applied in the last-V-tile epilogue.
# ---------------------------------------------------------------------------
def _st_kernel(w4_ref, w5_ref, b5_ref, st_ref):
    v = pl.program_id(1)

    @pl.when(v == 0)
    def _():
        st_ref[...] = jnp.zeros_like(st_ref)

    # (th, 2E) += W4_tile^T @ W5_tile^T  (contract the shared vocab-tile axis)
    st_ref[...] += lax.dot_general(
        w4_ref[...], w5_ref[...],
        dimension_numbers=(((0,), (1,)), ((), ())),
        preferred_element_type=jnp.float32)

    @pl.when(v == pl.num_programs(1) - 1)
    def _():
        st_ref[...] = jnp.maximum(st_ref[...] + b5_ref[...], 0.0)


def compute_st(w4, w51, b51, w52, b52, *, compute_dtype=jnp.bfloat16):
    V, H = w4.shape
    E, V2 = w51.shape
    assert V == V2 and w52.shape == (E, V)
    E2 = 2 * E
    it = np.dtype(compute_dtype).itemsize
    phys = _physical_vmem_bytes()
    budget = phys // 2

    H_pad = _round_up(H, 128)
    th = next(c for c in (1024, 512, 256, 128) if c <= H_pad and H_pad % c == 0)
    cap = _round_up(V, 128)
    tv = min(128, cap)
    for cand in (2048, 1024, 512, 256, 128):
        t = min(cand, cap)
        need = (2 * t * th * it + 2 * E2 * t * it + 2 * th * E2 * 4
                + 2 * E2 * 4 + (64 << 10))
        if need <= budget:
            tv = t
            break
    V_pad = _round_up(V, tv)
    nh, nv = H_pad // th, V_pad // tv

    w4_p = w4
    if V_pad != V or H_pad != H:
        w4_p = jnp.pad(w4, ((0, V_pad - V), (0, H_pad - H)))
    w4_c = w4_p.astype(compute_dtype)
    w5 = jnp.concatenate([w51, w52], axis=0)                       # (2E, V)
    if V_pad != V:
        w5 = jnp.pad(w5, ((0, 0), (0, V_pad - V)))
    w5 = w5.astype(compute_dtype)
    b5 = jnp.concatenate([b51, b52], axis=0).reshape(1, E2).astype(jnp.float32)

    need = (2 * tv * th * it + 2 * E2 * tv * it + 2 * th * E2 * 4
            + 2 * E2 * 4 + (64 << 10))
    cost = pl.CostEstimate(
        flops=2 * H_pad * V_pad * E2 + 2 * H_pad * E2,
        transcendentals=0,
        bytes_accessed=(V_pad * H_pad * it + nh * E2 * V_pad * it
                        + E2 * 4 + H_pad * E2 * 4))

    st = pl.pallas_call(
        _st_kernel,
        out_shape=jax.ShapeDtypeStruct((H_pad, E2), jnp.float32),
        grid_spec=pltpu.PrefetchScalarGridSpec(
            num_scalar_prefetch=0,
            grid=(nh, nv),
            in_specs=[
                pl.BlockSpec((tv, th), lambda hh, vv: (vv, hh)),   # W4 tile
                pl.BlockSpec((E2, tv), lambda hh, vv: (0, vv)),    # fused [W51; W52]
                pl.BlockSpec((1, E2), lambda hh, vv: (0, 0)),      # fused bias
            ],
            out_specs=pl.BlockSpec((th, E2), lambda hh, vv: (hh, 0))),
        compiler_params=pltpu.CompilerParams(
            dimension_semantics=("parallel", "arbitrary"),
            vmem_limit_bytes=_vmem_limit_bytes(need, phys)),
        cost_estimate=cost,
    )(w4_c, w5, b5)

    if H_pad != H:
        st = st[:H]
    return st[:, :E], st[:, E:]


def generative_decoder_forward(h, w4, b4, w51, b51, w52, b52, *,
                               compute_dtype=jnp.bfloat16):
    """Drop-in equivalent of GenerativeDecoder.forward.

    In a generation loop, call `prepare_decode_weights` and `compute_st` once
    per weight set and only `decode_step` per token — s, t and the weight
    cast/pad do not depend on h.
    """
    # TODO(synk): the PyTorch forward uses an undefined `x`; interpreted as `h`.
    prep = prepare_decode_weights(w4, b4, compute_dtype=compute_dtype)
    p = decode_step(h, prep)
    s, t = compute_st(w4, w51, b51, w52, b52, compute_dtype=compute_dtype)
    return p, s, t


def _init_linear(key, out_features, in_features):
    """Deterministic PyTorch-style uniform(-1/sqrt(fan_in), 1/sqrt(fan_in)) init."""
    kw, kb = jax.random.split(key)
    bound = 1.0 / jnp.sqrt(jnp.float32(in_features))
    w = jax.random.uniform(kw, (out_features, in_features), jnp.float32, -bound, bound)
    b = jax.random.uniform(kb, (out_features,), jnp.float32, -bound, bound)
    return w, b


def _reference(h, w4, b4, w51, b51, w52, b52):
    e = -1.0 * (h @ w4.T + b4)
    p = jax.nn.softmax(e, axis=1)
    wt = w4.T
    s = jnp.maximum(wt @ w51.T + b51, 0.0)
    t = jnp.maximum(wt @ w52.T + b52, 0.0)
    return p, s, t


if __name__ == "__main__":
    # Small shapes consistent with the module: batch=8, hidden=32, vocab=64,
    # embed=32.  At these toy sizes the kernels are pure launch/DMA overhead;
    # the streaming / padding / bf16 choices pay off at realistic vocab sizes.
    batch, hidden_size, vocab_size, embedding_size = 8, 32, 64, 32

    key = jax.random.PRNGKey(0)
    k_h, k4, k51, k52 = jax.random.split(key, 4)

    h = jax.random.normal(k_h, (batch, hidden_size), jnp.float32)
    w4, b4 = _init_linear(k4, vocab_size, hidden_size)        # fc4
    w51, b51 = _init_linear(k51, embedding_size, vocab_size)  # fc51
    w52, b52 = _init_linear(k52, embedding_size, vocab_size)  # fc52

    p_ref, s_ref, t_ref = _reference(h, w4, b4, w51, b51, w52, b52)

    # Default path: bf16 operands, f32 accumulation/outputs, approx reciprocal.
    p, s, t = generative_decoder_forward(h, w4, b4, w51, b51, w52, b52)
    jax.block_until_ready((p, s, t))
    assert p.shape == (batch, vocab_size)
    assert s.shape == (hidden_size, embedding_size)
    assert t.shape == (hidden_size, embedding_size)
    assert jnp.allclose(p, p_ref, atol=2e-3, rtol=2e-2)
    assert jnp.allclose(s, s_ref, atol=2e-2, rtol=2e-2)
    assert jnp.allclose(t, t_ref, atol=2e-2, rtol=2e-2)

    # f32 path (exact reciprocal): tight check of the kernel structure itself.
    p32, s32, t32 = generative_decoder_forward(
        h, w4, b4, w51, b51, w52, b52, compute_dtype=jnp.float32)
    jax.block_until_ready((p32, s32, t32))
    assert jnp.allclose(p32, p_ref, atol=1e-5, rtol=1e-5)
    assert jnp.allclose(s32, s_ref, atol=1e-5, rtol=1e-5)
    assert jnp.allclose(t32, t_ref, atol=1e-5, rtol=1e-5)

    print("KERNEL_OK")
</pallas_src>

<mosaic_0001>
module attributes {stable_mosaic.version = 11 : i64} {
  func.func @_decode_logits_kernel(%arg0: i32, %arg1: memref<8x128xbf16, #tpu.memory_space<vmem>>, %arg2: memref<128x128xbf16, #tpu.memory_space<vmem>>, %arg3: memref<1x128xf32, #tpu.memory_space<vmem>>, %arg4: memref<8x128xf32, #tpu.memory_space<vmem>>, %arg5: memref<8x1xf32, #tpu.memory_space<vmem>>, %arg6: memref<8x1xf32, #tpu.memory_space<vmem>>, %arg7: memref<8x1xf32, #tpu.memory_space<vmem>>, %arg8: memref<8x1xf32, #tpu.memory_space<vmem>>) attributes {dimension_semantics = [#tpu.dimension_semantics<arbitrary>], iteration_bounds = array<i64: 1>, scalar_prefetch = 0 : i64, scratch_operands = 2 : i64, tpu.core_type = #tpu.core_type<tc>, window_params = [{pipeline_mode = #tpu.pipeline_mode<synchronous>, transform_indices = @transform_0, window_bounds = array<i64: 8, 128>}, {transform_indices = @transform_1, window_bounds = array<i64: 128, 128>}, {transform_indices = @transform_2, window_bounds = array<i64: 1, 128>}, {transform_indices = @transform_3, window_bounds = array<i64: 8, 128>}, {pipeline_mode = #tpu.pipeline_mode<synchronous>, transform_indices = @transform_4, window_bounds = array<i64: 8, 1>}, {pipeline_mode = #tpu.pipeline_mode<synchronous>, transform_indices = @transform_5, window_bounds = array<i64: 8, 1>}]} {
    %c0_i32 = arith.constant 0 : i32
    %0 = arith.cmpi eq, %arg0, %c0_i32 : i32
    %1 = arith.extui %0 : i1 to i32
    %c0_i32_0 = arith.constant 0 : i32
    %2 = arith.cmpi ne, %1, %c0_i32_0 : i32
    scf.if %2 {
      %cst_23 = arith.constant 0xFF800000 : f32
      %30 = vector.broadcast %cst_23 : f32 to vector<8x1xf32>
      %c0_24 = arith.constant 0 : index
      %c0_25 = arith.constant 0 : index
      %31 = vector.load %arg7[%c0_24, %c0_25] : memref<8x1xf32, #tpu.memory_space<vmem>>, vector<8x1xf32>
      tpu.vector_store %arg7[%c0_24, %c0_25], %30 {strides = array<i32>} : memref<8x1xf32, #tpu.memory_space<vmem>>, vector<8x1xf32>,
      %cst_26 = arith.constant 0.000000e+00 : f32
      %32 = vector.broadcast %cst_26 : f32 to vector<8x1xf32>
      %c0_27 = arith.constant 0 : index
      %c0_28 = arith.constant 0 : index
      %33 = vector.load %arg8[%c0_27, %c0_28] : memref<8x1xf32, #tpu.memory_space<vmem>>, vector<8x1xf32>
      tpu.vector_store %arg8[%c0_27, %c0_28], %32 {strides = array<i32>} : memref<8x1xf32, #tpu.memory_space<vmem>>, vector<8x1xf32>,
    } else {
    }
    %c0 = arith.constant 0 : index
    %c0_1 = arith.constant 0 : index
    %3 = vector.load %arg1[%c0, %c0_1] : memref<8x128xbf16, #tpu.memory_space<vmem>>, vector<8x128xbf16>
    %c0_2 = arith.constant 0 : index
    %c0_3 = arith.constant 0 : index
    %4 = vector.load %arg2[%c0_2, %c0_3] : memref<128x128xbf16, #tpu.memory_space<vmem>>, vector<128x128xbf16>
    %cst = arith.constant dense<0.000000e+00> : vector<8x128xf32>
    %5 = tpu.matmul %3, %4, %cst {dimension_numbers = #tpu.dot_dimension_numbers<[1], [1], [0], [0], [0, 0, 1, 0], [], []>} : vector<8x128xbf16>, vector<128x128xbf16>, vector<8x128xf32> -> vector<8x128xf32>
    %c0_4 = arith.constant 0 : index
    %c0_5 = arith.constant 0 : index
    %6 = vector.load %arg3[%c0_4, %c0_5] : memref<1x128xf32, #tpu.memory_space<vmem>>, vector<1x128xf32>
    %7 = vector.broadcast %6 : vector<1x128xf32> to vector<8x128xf32>
    %8 = arith.addf %5, %7 : vector<8x128xf32>
    %cst_6 = arith.constant 0.000000e+00 : f32
    %9 = vector.broadcast %cst_6 : f32 to vector<8x128xf32>
    %10 = arith.subf %9, %8 : vector<8x128xf32>
    %c0_7 = arith.constant 0 : index
    %c0_8 = arith.constant 0 : index
    %11 = vector.load %arg4[%c0_7, %c0_8] : memref<8x128xf32, #tpu.memory_space<vmem>>, vector<8x128xf32>
    tpu.vector_store %arg4[%c0_7, %c0_8], %10 {strides = array<i32>} : memref<8x128xf32, #tpu.memory_space<vmem>>, vector<8x128xf32>,
    %c0_9 = arith.constant 0 : index
    %c0_10 = arith.constant 0 : index
    %12 = vector.load %arg7[%c0_9, %c0_10] : memref<8x1xf32, #tpu.memory_space<vmem>>, vector<8x1xf32>
    %cst_11 = arith.constant dense<0xFF800000> : vector<8xf32>
    %13 = vector.multi_reduction <maximumf>, %10, %cst_11 [1] : vector<8x128xf32> to vector<8xf32>
    %14 = vector.shape_cast %13 : vector<8xf32> to vector<8x1xf32>
    %15 = arith.maximumf %12, %14 : vector<8x1xf32>
    %c0_12 = arith.constant 0 : index
    %c0_13 = arith.constant 0 : index
    %16 = vector.load %arg8[%c0_12, %c0_13] : memref<8x1xf32, #tpu.memory_space<vmem>>, vector<8x1xf32>
    %17 = arith.subf %12, %15 : vector<8x1xf32>
    %18 = math.exp %17 : vector<8x1xf32>
    %19 = arith.mulf %16, %18 : vector<8x1xf32>
    %20 = vector.broadcast %15 : vector<8x1xf32> to vector<8x128xf32>
    %21 = arith.subf %10, %20 : vector<8x128xf32>
    %22 = math.exp %21 : vector<8x128xf32>
    %cst_14 = arith.constant dense<0.000000e+00> : vector<8xf32>
    %23 = vector.multi_reduction <add>, %22, %cst_14 [1] : vector<8x128xf32> to vector<8xf32>
    %24 = vector.shape_cast %23 : vector<8xf32> to vector<8x1xf32>
    %25 = arith.addf %19, %24 : vector<8x1xf32>
    %c0_15 = arith.constant 0 : index
    %c0_16 = arith.constant 0 : index
    %26 = vector.load %arg7[%c0_15, %c0_16] : memref<8x1xf32, #tpu.memory_space<vmem>>, vector<8x1xf32>
    tpu.vector_store %arg7[%c0_15, %c0_16], %15 {strides = array<i32>} : memref<8x1xf32, #tpu.memory_space<vmem>>, vector<8x1xf32>,
    %c0_17 = arith.constant 0 : index
    %c0_18 = arith.constant 0 : index
    %27 = vector.load %arg8[%c0_17, %c0_18] : memref<8x1xf32, #tpu.memory_space<vmem>>, vector<8x1xf32>
    tpu.vector_store %arg8[%c0_17, %c0_18], %25 {strides = array<i32>} : memref<8x1xf32, #tpu.memory_space<vmem>>, vector<8x1xf32>,
    %c0_19 = arith.constant 0 : index
    %c0_20 = arith.constant 0 : index
    %28 = vector.load %arg5[%c0_19, %c0_20] : memref<8x1xf32, #tpu.memory_space<vmem>>, vector<8x1xf32>
    tpu.vector_store %arg5[%c0_19, %c0_20], %15 {strides = array<i32>} : memref<8x1xf32, #tpu.memory_space<vmem>>, vector<8x1xf32>,
    %c0_21 = arith.constant 0 : index
    %c0_22 = arith.constant 0 : index
    %29 = vector.load %arg6[%c0_21, %c0_22] : memref<8x1xf32, #tpu.memory_space<vmem>>, vector<8x1xf32>
    tpu.vector_store %arg6[%c0_21, %c0_22], %25 {strides = array<i32>} : memref<8x1xf32, #tpu.memory_space<vmem>>, vector<8x1xf32>,
    return
  }
  func.func @transform_0(%arg0: i32) -> (i32, i32) {
    %c0_i32 = arith.constant 0 : i32
    %c0_i32_0 = arith.constant 0 : i32
    %c0_i32_1 = arith.constant 0 : i32
    return %c0_i32, %c0_i32_0 : i32, i32
  }
  func.func @transform_1(%arg0: i32) -> (i32, i32) {
    %c0_i32 = arith.constant 0 : i32
    %c0_i32_0 = arith.constant 0 : i32
    return %arg0, %c0_i32 : i32, i32
  }
  func.func @transform_2(%arg0: i32) -> (i32, i32) {
    %c0_i32 = arith.constant 0 : i32
    %c0_i32_0 = arith.constant 0 : i32
    return %c0_i32, %arg0 : i32, i32
  }
  func.func @transform_3(%arg0: i32) -> (i32, i32) {
    %c0_i32 = arith.constant 0 : i32
    %c0_i32_0 = arith.constant 0 : i32
    return %c0_i32, %arg0 : i32, i32
  }
  func.func @transform_4(%arg0: i32) -> (i32, i32) {
    %c0_i32 = arith.constant 0 : i32
    %c0_i32_0 = arith.constant 0 : i32
    %c0_i32_1 = arith.constant 0 : i32
    return %c0_i32, %c0_i32_0 : i32, i32
  }
  func.func @transform_5(%arg0: i32) -> (i32, i32) {
    %c0_i32 = arith.constant 0 : i32
    %c0_i32_0 = arith.constant 0 : i32
    %c0_i32_1 = arith.constant 0 : i32
    return %c0_i32, %c0_i32_0 : i32, i32
  }
}

</mosaic_0001>

<llo_original>
// kernel: tpu_custom_call.1
$region0: #{tpu_custom_call.1}
  #allocation0 [shape = 'u32[]', space=smem, size = 0x4, offset = 0x4, fixed_abs, tag = 'smem constant byte address 0x4 - core index']
  #allocation1 [shape = 'u32[144,128]{1,0:T(1,128)}', space=vmem, size = 0x12000, scoped, tag = 'internal scratch']
  #allocation2 [shape = 'f32[8,1]{1,0:T(8,128)}', space=vmem, size = 0x1000, scoped, tag = 'scratch operand']
  #allocation3 [shape = 'f32[8,1]{1,0:T(8,128)}', space=vmem, size = 0x1000, scoped, tag = 'scratch operand']
  %s0 = inlined_call_operand.hbm [shape: bf16[8,128], index: 0, kind: input, shape index: {}]
  %s1 = inlined_call_operand.hbm [shape: bf16[128,128], index: 1, kind: input, shape index: {}]
  %s2 = inlined_call_operand.vmem [shape: f32[1,128], index: 2, kind: input, shape index: {}]
  %s3 = inlined_call_operand.hbm [shape: f32[8,128], index: 3, kind: output, shape index: {0}]
  %s4 = inlined_call_operand.vmem [shape: f32[8,1], index: 4, kind: output, shape index: {1}]
  %s5 = inlined_call_operand.vmem [shape: f32[8,1], index: 5, kind: output, shape index: {2}]
  %6 = xla_tuple %s3, %s4, %s5
  %s7 = sld [smem:[#allocation0]]
  $region50: #{tpu_custom_call.1} parent=0
    _
  %s9 = ssub.s32 1, %s7
  %s10 = scalar_select 0, %s9, %s7
  $region1: #{tpu_custom_call.1} parent=0
    #allocation4 [shape = 'u8[2048]{0}', space=vmem, size = 0x800, scoped, tag = 'input window, operand 0, single buffered']
    #allocation5 [shape = 's32[1]{0}', space=sflag, size = 0x4, scoped, tag = 'scoped memory for tpu_custom_call.1']
    #allocation6 [shape = 's32[1]{0}', space=sflag, size = 0x4, scoped, tag = 'scoped memory for tpu_custom_call.1']
    #allocation7 [shape = 'u8[32768]{0}', space=vmem, size = 0x8000, scoped, tag = 'input window, operand 1, single buffered']
    #allocation8 [shape = 's32[1]{0}', space=sflag, size = 0x4, scoped, tag = 'scoped memory for tpu_custom_call.1']
    #allocation9 [shape = 'u8[4096]{0}', space=vmem, size = 0x1000, scoped, tag = 'output window, operand 0, single buffered']
    %11 = vsyncpa [#allocation5], 0
    %12 = vsyncpa [#allocation8], 0
    %13 = vsyncpa [#allocation6], 0
    // Predicated region
    $region2: #{tpu_custom_call.1} parent=1 // pred_check
      _
    $region3: #{tpu_custom_call.1} parent=1 // pred_check_branch
      %15 = sbr.rel (0) target = $region5
    $region4: #{tpu_custom_call.1} parent=1 // pred_region
      %s17 = ssub.s32 64, 64
      %18 = vsyncadd [#allocation5], %s17
      %s20 = sshll.u32 [#allocation4], 4
      %s21 = int_to_ptr.vmem [resolvable:$true] %s20
      %23 = dma.hbm_to_vmem [thread:$0]  %s0, 64, %s21, [#allocation5]
    $region5: #{tpu_custom_call.1} parent=1 // pred_fallthru
      _
    // Predicated region
    $region6: #{tpu_custom_call.1} parent=1 // pred_check
      _
    $region7: #{tpu_custom_call.1} parent=1 // pred_check_branch
      %25 = sbr.rel (0) target = $region9
    $region8: #{tpu_custom_call.1} parent=1 // pred_region
      %s27 = ssub.s32 1024, 1024
      %28 = vsyncadd [#allocation8], %s27
      %s29 = sshll.u32 [#allocation7], 4
      %s30 = int_to_ptr.vmem [resolvable:$true] %s29
      %35 = dma.hbm_to_vmem [thread:$0]  %s1, 1024, %s30, [#allocation8], 64, 64, 4
    $region9: #{tpu_custom_call.1} parent=1 // pred_fallthru
      _
    // Predicated region
    $region10: #{tpu_custom_call.1} parent=1 // pred_check
      _
    $region11: #{tpu_custom_call.1} parent=1 // pred_check_branch
      %37 = sbr.rel (0) target = $region13
    $region12: #{tpu_custom_call.1} parent=1 // pred_region
      _
    $region13: #{tpu_custom_call.1} parent=1 // pred_fallthru
      _
    // Predicated region
    $region14: #{tpu_custom_call.1} parent=1 // pred_check
      _
    $region15: #{tpu_custom_call.1} parent=1 // pred_check_branch
      %39 = sbr.rel (0) target = $region17
    $region16: #{tpu_custom_call.1} parent=1 // pred_region
      %40 = dma.done [#allocation5], 64
    $region17: #{tpu_custom_call.1} parent=1 // pred_fallthru
      _
    // Predicated region
    $region18: #{tpu_custom_call.1} parent=1 // pred_check
      _
    $region19: #{tpu_custom_call.1} parent=1 // pred_check_branch
      %42 = sbr.rel (0) target = $region21
    $region20: #{tpu_custom_call.1} parent=1 // pred_region
      %43 = dma.done [#allocation8], 1024
    $region21: #{tpu_custom_call.1} parent=1 // pred_fallthru
      _
    %p45 = scmp.eq.s32.totalorder 0, 0
    // Predicated region
    $region22: #{tpu_custom_call.1} parent=1 // pred_check
      %p46 = pneg %p45
    $region23: #{tpu_custom_call.1} parent=1 // pred_check_branch
      %48 = sbr.rel (%p46) target = $region25
    $region24: #{tpu_custom_call.1} parent=1 // pred_region
      %vm49 = vcmask 7168
      %50 = vst.msk [vmem:[#allocation2] sm:$0xff] %vm49, -inf
      %51 = vst.msk [vmem:[#allocation3] sm:$0xff] %vm49, 0.0
    $region25: #{tpu_custom_call.1} parent=1 // pred_fallthru
      _
    %v52 = vld [vmem:[#allocation4] sm:$0xf]
    %v53 = vld [vmem:[#allocation7] sm:$0xf]
    %v54 = vld [vmem:[#allocation7 + $0x4] sm:$0xf]
    %v55 = vld [vmem:[#allocation7 + $0x8] sm:$0xf]
    %v56 = vld [vmem:[#allocation7 + $0xc] sm:$0xf]
    %v57 = vld [vmem:[#allocation7 + $0x10] sm:$0xf]
    %v58 = vld [vmem:[#allocation7 + $0x14] sm:$0xf]
    %v59 = vld [vmem:[#allocation7 + $0x18] sm:$0xf]
    %v60 = vld [vmem:[#allocation7 + $0x1c] sm:$0xf]
    %v61 = vld [vmem:[#allocation7 + $0x20] sm:$0xf]
    %v62 = vld [vmem:[#allocation7 + $0x24] sm:$0xf]
    %v63 = vld [vmem:[#allocation7 + $0x28] sm:$0xf]
    %v64 = vld [vmem:[#allocation7 + $0x2c] sm:$0xf]
    %v65 = vld [vmem:[#allocation7 + $0x30] sm:$0xf]
    %v66 = vld [vmem:[#allocation7 + $0x34] sm:$0xf]
    %v67 = vld [vmem:[#allocation7 + $0x38] sm:$0xf]
    %v68 = vld [vmem:[#allocation7 + $0x3c] sm:$0xf]
    %v69 = vld [vmem:[%s2] sm:$0x1]
    %v71 = vlaneseq
    %v72 = vshrl.u32 %v71, 7
    %v73 = vsub.s32 0, %v72
    %v74 = vrot.slane %v69, %v73
    %v92 = vunpack.c.l.b16 %v53
    %v93 = vunpack.c.l.b16 %v54
    %v94 = vunpack.c.l.b16 %v55
    %v95 = vunpack.c.l.b16 %v56
    %v96 = vunpack.c.l.b16 %v57
    %v97 = vunpack.c.l.b16 %v58
    %v98 = vunpack.c.l.b16 %v59
    %v99 = vunpack.c.l.b16 %v60
    %v100 = vunpack.c.l.b16 %v61
    %v101 = vunpack.c.l.b16 %v62
    %v102 = vunpack.c.l.b16 %v63
    %v103 = vunpack.c.l.b16 %v64
    %v104 = vunpack.c.l.b16 %v65
    %v105 = vunpack.c.l.b16 %v66
    %v106 = vunpack.c.l.b16 %v67
    %v107 = vunpack.c.l.b16 %v68
    %v108 = vpack.c.b16 %v93, %v92
    %v109 = vpack.c.b16 %v95, %v94
    %v110 = vpack.c.b16 %v97, %v96
    %v111 = vpack.c.b16 %v99, %v98
    %v112 = vpack.c.b16 %v101, %v100
    %v113 = vpack.c.b16 %v103, %v102
    %v114 = vpack.c.b16 %v105, %v104
    %v115 = vpack.c.b16 %v107, %v106
    %124 = vmatprep.subr.bf16.mxu0 0
    %125 = vmatpush1.bf16.xpose.msra.mxu0 %v108
    %126 = vmatprep.subr.bf16.mxu0 0
    %127 = vmatpush1.bf16.xpose.msra.mxu0 %v109
    %128 = vmatprep.subr.bf16.mxu0 0
    %129 = vmatpush1.bf16.xpose.msra.mxu0 %v110
    %130 = vmatprep.subr.bf16.mxu0 0
    %131 = vmatpush1.bf16.xpose.msra.mxu0 %v111
    %132 = vmatprep.subr.bf16.mxu0 0
    %133 = vmatpush1.bf16.xpose.msra.mxu0 %v112
    %134 = vmatprep.subr.bf16.mxu0 0
    %135 = vmatpush1.bf16.xpose.msra.mxu0 %v113
    %136 = vmatprep.subr.bf16.mxu0 0
    %137 = vmatpush1.bf16.xpose.msra.mxu0 %v114
    %138 = vmatprep.subr.bf16.mxu0 0
    %139 = vmatpush1.bf16.xpose.msra.mxu0 %v115
    %140 = vmatprep.subr.bf16.mxu0 0
    %141 = vmatpush1.bf16.xpose.msra.mxu0 0
    %142 = vmatprep.subr.bf16.mxu0 0
    %143 = vmatpush1.bf16.xpose.msra.mxu0 0
    %144 = vmatprep.subr.bf16.mxu0 0
    %145 = vmatpush1.bf16.xpose.msra.mxu0 0
    %146 = vmatprep.subr.bf16.mxu0 0
    %147 = vmatpush1.bf16.xpose.msra.mxu0 0
    %148 = vmatprep.subr.bf16.mxu0 0
    %149 = vmatpush1.bf16.xpose.msra.mxu0 0
    %150 = vmatprep.subr.bf16.mxu0 0
    %151 = vmatpush1.bf16.xpose.msra.mxu0 0
    %152 = vmatprep.subr.bf16.mxu0 0
    %153 = vmatpush1.bf16.xpose.msra.mxu0 0
    %154 = vmatprep.subr.bf16.mxu0 0
    %155 = vmatpush1.bf16.xpose.msra.mxu0 0
    %156 = vmatprep.mubr.bf16.mxu0 0
    %157 = vmatmul.mubr.bf16.gmra.mrb[0].mxu0 %v52
    %v158 = vpop.f32.mrb[0].mxu0
    %v159 = vadd.f32 %v74, %v158
    %v160 = vpop.f32.mrb[0].mxu0
    %v161 = vpop.f32.mrb[0].mxu0
    %v162 = vpop.f32.mrb[0].mxu0
    %163 = vdwg.mxu0
    %v164 = vsub.f32 0.0, %v159
    %165 = vst [vmem:[#allocation9] sm:$0xff] %v164
    %v166 = vld [vmem:[#allocation2] sm:$0xff]
    %167 = vmax.xlane.f32.xlu0 %v164
    %v168 = vpop.xlane.xlu0 %167
    %v169 = vmax.f32 %v166, %v168
    %v170 = vld [vmem:[#allocation3] sm:$0xff]
    %v171 = vsub.f32 %v166, %v169
    %v172 = vmul.f32 %v171, 1.442695
    %v173 = vpow.pop %v172
    %v174 = vmul.f32 %v170, %v173
    %176 = vset.pattern.permute.xlu0 0
    %177 = vperm.xlu0 %176, %v169
    %v178 = vpop.permute.xlu0 %177
    %v180 = vsub.f32 %v164, %v178
    %v181 = vmul.f32 %v180, 1.442695
    %v182 = vpow.pop %v181
    %183 = vadd.xlane.f32.xlu0 %v182
    %v184 = vpop.xlane.xlu0 %183
    %v185 = vadd.f32 %v174, %v184
    %vm186 = vcmask 7168
    %187 = vst.msk [vmem:[#allocation2] sm:$0xff] %vm186, %v169
    %188 = vst.msk [vmem:[#allocation3] sm:$0xff] %vm186, %v185
    %189 = vst.msk [vmem:[%s4] sm:$0xff] %vm186, %v169
    %190 = vst.msk [vmem:[%s5] sm:$0xff] %vm186, %v185
    // Predicated region
    $region26: #{tpu_custom_call.1} parent=1 // pred_check
      _
    $region27: #{tpu_custom_call.1} parent=1 // pred_check_branch
      %192 = sbr.rel (0) target = $region29
    $region28: #{tpu_custom_call.1} parent=1 // pred_region
      %s194 = ssub.s32 128, 128
      %195 = vsyncadd [#allocation6], %s194
      %s197 = sshll.u32 [#allocation9], 4
      %s198 = int_to_ptr.vmem [resolvable:$true] %s197
      %200 = dma.vmem_to_hbm [thread:$0]  %s198, 128, %s3, [#allocation6]
    $region29: #{tpu_custom_call.1} parent=1 // pred_fallthru
      _
    // Predicated region
    $region30: #{tpu_custom_call.1} parent=1 // pred_check
      _
    $region31: #{tpu_custom_call.1} parent=1 // pred_check_branch
      %202 = sbr.rel (0) target = $region33
    $region32: #{tpu_custom_call.1} parent=1 // pred_region
      _
    $region33: #{tpu_custom_call.1} parent=1 // pred_fallthru
      _
    // Predicated region
    $region34: #{tpu_custom_call.1} parent=1 // pred_check
      _
    $region35: #{tpu_custom_call.1} parent=1 // pred_check_branch
      %204 = sbr.rel (0) target = $region37
    $region36: #{tpu_custom_call.1} parent=1 // pred_region
      _
    $region37: #{tpu_custom_call.1} parent=1 // pred_fallthru
      _
    // Predicated region
    $region38: #{tpu_custom_call.1} parent=1 // pred_check
      _
    $region39: #{tpu_custom_call.1} parent=1 // pred_check_branch
      %206 = sbr.rel (0) target = $region41
    $region40: #{tpu_custom_call.1} parent=1 // pred_region
      %207 = dma.done [#allocation6], 128
    $region41: #{tpu_custom_call.1} parent=1 // pred_fallthru
      _
    // Predicated region
    $region42: #{tpu_custom_call.1} parent=1 // pred_check
      _
    $region43: #{tpu_custom_call.1} parent=1 // pred_check_branch
      %209 = sbr.rel (0) target = $region45
    $region44: #{tpu_custom_call.1} parent=1 // pred_region
      _
    $region45: #{tpu_custom_call.1} parent=1 // pred_fallthru
      _
    // Predicated region
    $region46: #{tpu_custom_call.1} parent=1 // pred_check
      _
    $region47: #{tpu_custom_call.1} parent=1 // pred_check_branch
      %211 = sbr.rel (0) target = $region49
    $region48: #{tpu_custom_call.1} parent=1 // pred_region
      _
    $region49: #{tpu_custom_call.1} parent=1 // pred_fallthru
      _
    %212 = vsyncpa [#allocation5], 1
    %213 = vsyncpa [#allocation8], 1
    %214 = vsyncpa [#allocation6], 1

</llo_original>
